<compile_context>
chip_gen: v5e
topology: v5e:2x2
jax: 0.10.0
libtpu: 0.0.40
codegen_flags: <defaults>
</compile_context>

<pallas_src>
import functools

import jax
import jax.numpy as jnp
from jax.experimental import pallas as pl
from jax.experimental.pallas import tpu as pltpu

_LANE = 128                            # lane width (last-dim tiling unit)
_SUBLANE = 8                           # sublane height (second-to-last dim)
_MAX_TB = 1024                         # batch-tile cap (rows)
_VMEM_TILE_BUDGET = 32 * 1024 * 1024   # budget for pipelined blocks (fits v7x 64 MiB)
_VMEM_LIMIT = 48 * 1024 * 1024         # scoped VMEM limit handed to Mosaic


def _round_up(n, m):
    return ((n + m - 1) // m) * m


def mlp_kernel(x_ref, w1_ref, b1_ref, w2_ref, b2_ref, o_ref):
    """Fused Linear+ReLU -> Linear+ReLU for one batch tile, all in VMEM.

    x_ref  : (TB, Sp)  input dtype (cast to MXU dtype in-kernel)
    w1_ref : (Sp, Hp)  MXU dtype (pre-transposed to (in, out), zero-padded)
    b1_ref : (1,  Hp)  f32
    w2_ref : (Hp, Sp)  MXU dtype
    b2_ref : (1,  Sp)  f32
    o_ref  : (TB, Sp)  out dtype
    """
    wt = w1_ref.dtype
    # MXU matmuls with f32 accumulation; bias + ReLU on the VPU in f32
    # (matches PyTorch math; safe on v5e which lacks bf16 VPU).
    h = jnp.dot(x_ref[...].astype(wt), w1_ref[...],
                preferred_element_type=jnp.float32)
    h = jnp.maximum(h + b1_ref[...], 0.0)
    out = jnp.dot(h.astype(wt), w2_ref[...],
                  preferred_element_type=jnp.float32)
    out = jnp.maximum(out + b2_ref[...], 0.0)
    o_ref[...] = out.astype(o_ref.dtype)


def prepare_mlp_params(w1, b1, w2, b2, compute_dtype=jnp.float32):
    """One-time (init-time) weight preparation.

    Transposes PyTorch (out, in) weights to (in, out) so the kernel does
    `x @ W`, and zero-pads hidden/feature dims to lane multiples.  Padded
    hidden units have zero weight + zero bias; ReLU keeps them zero, so the
    math is unchanged.  Biases stay f32.

    w1: (Hd, S)  b1: (Hd,)  w2: (S, Hd)  b2: (S,)
    Returns (w1_p, b1_p, w2_p, b2_p) with shapes (Sp,Hp), (1,Hp), (Hp,Sp), (1,Sp).
    """
    Hd, S = w1.shape
    Sp = _round_up(S, _LANE)
    Hp = _round_up(max(Hd, _LANE), _LANE)
    w1_p = jnp.zeros((Sp, Hp), compute_dtype).at[:S, :Hd].set(
        w1.T.astype(compute_dtype))
    b1_p = jnp.zeros((1, Hp), jnp.float32).at[0, :Hd].set(b1.astype(jnp.float32))
    w2_p = jnp.zeros((Hp, Sp), compute_dtype).at[:Hd, :S].set(
        w2.T.astype(compute_dtype))
    b2_p = jnp.zeros((1, Sp), jnp.float32).at[0, :S].set(b2.astype(jnp.float32))
    return w1_p, b1_p, w2_p, b2_p


def _choose_batch_tile(B, Sp, Hp, in_item, w_item, out_item):
    """Largest sublane-multiple batch tile that fits the VMEM budget."""
    # Weights/biases stay resident (constant index_map); count them
    # double-buffered to stay conservative.
    resident = 2 * (2 * Sp * Hp * w_item + (Hp + Sp) * 4)
    per_row = 2 * Sp * (in_item + out_item)       # double-buffered x + out blocks
    fit = max(_SUBLANE, (_VMEM_TILE_BUDGET - resident) // per_row)
    tb = max(_SUBLANE, (min(_MAX_TB, int(fit)) // _SUBLANE) * _SUBLANE)
    if B >= 2 * _SUBLANE:
        # Keep the grid >= 2 steps so v7x's two TensorCores both get work.
        tb = min(tb, _round_up(-(-B // 2), _SUBLANE))
    return tb


@functools.partial(jax.jit, static_argnames=("out_dtype",))
def mlp_forward(y, w1_p, b1_p, w2_p, b2_p, out_dtype=None):
    """y: arbitrary-rank array with batch dim first (e.g. NCHW).
    Weights must come from `prepare_mlp_params` (done once at init time)."""
    B = y.shape[0]
    S = 1
    for d in y.shape[1:]:
        S *= d
    Sp, Hp = w1_p.shape
    out_dtype = jnp.dtype(y.dtype if out_dtype is None else out_dtype)

    x = y.reshape(B, S)                       # free; no extra HBM pass
    if S != Sp:                               # rare fallback: feature dim not lane-aligned
        x = jnp.pad(x, ((0, 0), (0, Sp - S)))

    in_item = jnp.dtype(x.dtype).itemsize
    w_item = jnp.dtype(w1_p.dtype).itemsize
    out_item = out_dtype.itemsize

    tb = _choose_batch_tile(B, Sp, Hp, in_item, w_item, out_item)
    # Block dim == full array dim is always legal (small batch);
    # otherwise use a sublane-multiple tile and let Pallas mask the ragged
    # last block's store (no batch padding pass).
    TB = B if tb >= B else tb
    grid = (pl.cdiv(B, TB),)

    cost = pl.CostEstimate(
        flops=4 * B * Sp * Hp,                          # two matmuls, 2*M*N*K each
        transcendentals=0,
        bytes_accessed=(B * Sp * in_item                # x in
                        + 2 * Sp * Hp * w_item          # weights
                        + (Hp + Sp) * 4                 # biases
                        + B * Sp * out_item),           # out
    )

    out = pl.pallas_call(
        mlp_kernel,
        out_shape=jax.ShapeDtypeStruct((B, Sp), out_dtype),
        grid_spec=pltpu.PrefetchScalarGridSpec(
            num_scalar_prefetch=0,
            grid=grid,
            in_specs=[
                # activations stream over the batch grid (double-buffered)
                pl.BlockSpec((TB, Sp), lambda i: (i, 0)),
                # weights/biases stay VMEM-resident across grid steps
                pl.BlockSpec((Sp, Hp), lambda i: (0, 0)),
                pl.BlockSpec((1, Hp), lambda i: (0, 0)),
                pl.BlockSpec((Hp, Sp), lambda i: (0, 0)),
                pl.BlockSpec((1, Sp), lambda i: (0, 0)),
            ],
            out_specs=pl.BlockSpec((TB, Sp), lambda i: (i, 0)),
        ),
        compiler_params=pltpu.CompilerParams(
            dimension_semantics=("parallel",),   # batch axis -> shard across TCs on v7x
            vmem_limit_bytes=_VMEM_LIMIT,        # under v7x's 64 MiB physical VMEM
        ),
        cost_estimate=cost,
    )(x, w1_p, b1_p, w2_p, b2_p)

    if S != Sp:
        out = out[:, :S]
    return out.reshape(y.shape)


if __name__ == "__main__":
    key = jax.random.PRNGKey(0)

    # Small NCHW input consistent with the module: y = (B, C, H, W).
    B, C, H, W = 2, 4, 16, 16
    size = C * H * W                  # 1024 (flattened feature size)
    ratio1 = 0.01
    hidden = int(size * ratio1)       # 10

    k_y, k_w1, k_b1, k_w2, k_b2, k_y2 = jax.random.split(key, 6)
    y = jax.random.normal(k_y, (B, C, H, W), dtype=jnp.float32)

    # Deterministic init mimicking nn.Linear's U(-1/sqrt(in), 1/sqrt(in)).
    bound1 = 1.0 / (size ** 0.5)
    w1 = jax.random.uniform(k_w1, (hidden, size), jnp.float32, -bound1, bound1)
    b1 = jax.random.uniform(k_b1, (hidden,), jnp.float32, -bound1, bound1)
    bound2 = 1.0 / (hidden ** 0.5)
    w2 = jax.random.uniform(k_w2, (size, hidden), jnp.float32, -bound2, bound2)
    b2 = jax.random.uniform(k_b2, (size,), jnp.float32, -bound2, bound2)

    def ref_fwd(yy):
        xf = yy.reshape(yy.shape[0], -1)
        hh = jnp.maximum(xf @ w1.T + b1, 0.0)
        return jnp.maximum(hh @ w2.T + b2, 0.0).reshape(yy.shape)

    # --- f32 path: exact-semantics check (tight tolerance). ---
    params_f32 = prepare_mlp_params(w1, b1, w2, b2, compute_dtype=jnp.float32)
    out_f32 = jax.block_until_ready(mlp_forward(y, *params_f32))
    assert out_f32.shape == y.shape
    assert jnp.allclose(out_f32, ref_fwd(y), atol=1e-5, rtol=1e-5)

    # --- ragged multi-tile batch: exercises >=2 grid steps + masked last block. ---
    y2 = jax.random.normal(k_y2, (20, C, H, W), dtype=jnp.float32)
    out2 = jax.block_until_ready(mlp_forward(y2, *params_f32))
    assert out2.shape == y2.shape
    assert jnp.allclose(out2, ref_fwd(y2), atol=1e-5, rtol=1e-5)

    # --- bf16-weight MXU path (v6e/v7x bandwidth option): loose check. ---
    params_bf16 = prepare_mlp_params(w1, b1, w2, b2, compute_dtype=jnp.bfloat16)
    out_bf16 = jax.block_until_ready(mlp_forward(y, *params_bf16))
    assert out_bf16.shape == y.shape
    assert jnp.allclose(out_bf16, ref_fwd(y), atol=5e-2, rtol=5e-2)

    # --- bf16 output option (halves write-back traffic when tolerated). ---
    out_bf16o = jax.block_until_ready(
        mlp_forward(y, *params_bf16, out_dtype=jnp.bfloat16))
    assert out_bf16o.dtype == jnp.bfloat16 and out_bf16o.shape == y.shape

    print("KERNEL_OK")
</pallas_src>

<mosaic_0001>
module attributes {stable_mosaic.version = 11 : i64} {
  func.func @mlp_kernel(%arg0: i32, %arg1: memref<2x1024xf32, #tpu.memory_space<vmem>>, %arg2: memref<1024x128xf32, #tpu.memory_space<vmem>>, %arg3: memref<1x128xf32, #tpu.memory_space<vmem>>, %arg4: memref<128x1024xf32, #tpu.memory_space<vmem>>, %arg5: memref<1x1024xf32, #tpu.memory_space<vmem>>, %arg6: memref<2x1024xf32, #tpu.memory_space<vmem>>) attributes {dimension_semantics = [#tpu.dimension_semantics<parallel>], iteration_bounds = array<i64: 1>, scalar_prefetch = 0 : i64, scratch_operands = 0 : i64, tpu.core_type = #tpu.core_type<tc>, window_params = [{transform_indices = @transform_0, window_bounds = array<i64: 2, 1024>}, {pipeline_mode = #tpu.pipeline_mode<synchronous>, transform_indices = @transform_1, window_bounds = array<i64: 1024, 128>}, {pipeline_mode = #tpu.pipeline_mode<synchronous>, transform_indices = @transform_2, window_bounds = array<i64: 1, 128>}, {pipeline_mode = #tpu.pipeline_mode<synchronous>, transform_indices = @transform_3, window_bounds = array<i64: 128, 1024>}, {pipeline_mode = #tpu.pipeline_mode<synchronous>, transform_indices = @transform_4, window_bounds = array<i64: 1, 1024>}, {transform_indices = @transform_5, window_bounds = array<i64: 2, 1024>}]} {
    %c0 = arith.constant 0 : index
    %c0_0 = arith.constant 0 : index
    %0 = vector.load %arg1[%c0, %c0_0] : memref<2x1024xf32, #tpu.memory_space<vmem>>, vector<2x1024xf32>
    %c0_1 = arith.constant 0 : index
    %c0_2 = arith.constant 0 : index
    %1 = vector.load %arg2[%c0_1, %c0_2] : memref<1024x128xf32, #tpu.memory_space<vmem>>, vector<1024x128xf32>
    %cst = arith.constant dense<0.000000e+00> : vector<2x128xf32>
    %2 = tpu.matmul %0, %1, %cst {dimension_numbers = #tpu.dot_dimension_numbers<[1], [0], [0], [1], [0, 0, 1, 1], [], []>} : vector<2x1024xf32>, vector<1024x128xf32>, vector<2x128xf32> -> vector<2x128xf32>
    %c0_3 = arith.constant 0 : index
    %c0_4 = arith.constant 0 : index
    %3 = vector.load %arg3[%c0_3, %c0_4] : memref<1x128xf32, #tpu.memory_space<vmem>>, vector<1x128xf32>
    %4 = vector.broadcast %3 : vector<1x128xf32> to vector<2x128xf32>
    %5 = arith.addf %2, %4 : vector<2x128xf32>
    %cst_5 = arith.constant 0.000000e+00 : f32
    %6 = vector.broadcast %cst_5 : f32 to vector<2x128xf32>
    %7 = arith.maximumf %5, %6 : vector<2x128xf32>
    %c0_6 = arith.constant 0 : index
    %c0_7 = arith.constant 0 : index
    %8 = vector.load %arg4[%c0_6, %c0_7] : memref<128x1024xf32, #tpu.memory_space<vmem>>, vector<128x1024xf32>
    %cst_8 = arith.constant dense<0.000000e+00> : vector<2x1024xf32>
    %9 = tpu.matmul %7, %8, %cst_8 {dimension_numbers = #tpu.dot_dimension_numbers<[1], [0], [0], [1], [0, 0, 1, 1], [], []>} : vector<2x128xf32>, vector<128x1024xf32>, vector<2x1024xf32> -> vector<2x1024xf32>
    %c0_9 = arith.constant 0 : index
    %c0_10 = arith.constant 0 : index
    %10 = vector.load %arg5[%c0_9, %c0_10] : memref<1x1024xf32, #tpu.memory_space<vmem>>, vector<1x1024xf32>
    %11 = vector.broadcast %10 : vector<1x1024xf32> to vector<2x1024xf32>
    %12 = arith.addf %9, %11 : vector<2x1024xf32>
    %cst_11 = arith.constant 0.000000e+00 : f32
    %13 = vector.broadcast %cst_11 : f32 to vector<2x1024xf32>
    %14 = arith.maximumf %12, %13 : vector<2x1024xf32>
    %c0_12 = arith.constant 0 : index
    %c0_13 = arith.constant 0 : index
    %15 = vector.load %arg6[%c0_12, %c0_13] : memref<2x1024xf32, #tpu.memory_space<vmem>>, vector<2x1024xf32>
    tpu.vector_store %arg6[%c0_12, %c0_13], %14 {strides = array<i32>} : memref<2x1024xf32, #tpu.memory_space<vmem>>, vector<2x1024xf32>,
    return
  }
  func.func @transform_0(%arg0: i32) -> (i32, i32) {
    %c0_i32 = arith.constant 0 : i32
    %c0_i32_0 = arith.constant 0 : i32
    return %arg0, %c0_i32 : i32, i32
  }
  func.func @transform_1(%arg0: i32) -> (i32, i32) {
    %c0_i32 = arith.constant 0 : i32
    %c0_i32_0 = arith.constant 0 : i32
    %c0_i32_1 = arith.constant 0 : i32
    return %c0_i32, %c0_i32_0 : i32, i32
  }
  func.func @transform_2(%arg0: i32) -> (i32, i32) {
    %c0_i32 = arith.constant 0 : i32
    %c0_i32_0 = arith.constant 0 : i32
    %c0_i32_1 = arith.constant 0 : i32
    return %c0_i32, %c0_i32_0 : i32, i32
  }
  func.func @transform_3(%arg0: i32) -> (i32, i32) {
    %c0_i32 = arith.constant 0 : i32
    %c0_i32_0 = arith.constant 0 : i32
    %c0_i32_1 = arith.constant 0 : i32
    return %c0_i32, %c0_i32_0 : i32, i32
  }
  func.func @transform_4(%arg0: i32) -> (i32, i32) {
    %c0_i32 = arith.constant 0 : i32
    %c0_i32_0 = arith.constant 0 : i32
    %c0_i32_1 = arith.constant 0 : i32
    return %c0_i32, %c0_i32_0 : i32, i32
  }
  func.func @transform_5(%arg0: i32) -> (i32, i32) {
    %c0_i32 = arith.constant 0 : i32
    %c0_i32_0 = arith.constant 0 : i32
    return %arg0, %c0_i32 : i32, i32
  }
}

</mosaic_0001>

<llo_original>
// kernel: mlp_forward.1
$region0: #{mlp_forward.1}
  #allocation0 [shape = 'u32[]', space=smem, size = 0x4, offset = 0x4, fixed_abs, tag = 'smem constant byte address 0x4 - core index']
  #allocation1 [shape = 'u32[72,128]{1,0:T(1,128)}', space=vmem, size = 0x9000, scoped, tag = 'internal scratch']
  %s0 = inlined_call_operand.vmem [shape: f32[2,1024], index: 0, kind: input, shape index: {}]
  %s1 = inlined_call_operand.hbm [shape: f32[1024,128], index: 1, kind: input, shape index: {}]
  %s2 = inlined_call_operand.vmem [shape: f32[1,128], index: 2, kind: input, shape index: {}]
  %s3 = inlined_call_operand.hbm [shape: f32[128,1024], index: 3, kind: input, shape index: {}]
  %s4 = inlined_call_operand.vmem [shape: f32[1,1024], index: 4, kind: input, shape index: {}]
  %s5 = inlined_call_operand.vmem [shape: f32[2,1024], index: 5, kind: output, shape index: {}]
  %s6 = sld [smem:[#allocation0]]
  $region38: #{mlp_forward.1} parent=0
    _
  %s8 = ssub.s32 1, %s6
  %s9 = scalar_select 0, %s8, %s6
  $region1: #{mlp_forward.1} parent=0
    #allocation2 [shape = 'u8[524288]{0}', space=vmem, size = 0x80000, scoped, tag = 'input window, operand 1, single buffered']
    #allocation3 [shape = 's32[1]{0}', space=sflag, size = 0x4, scoped, tag = 'scoped memory for mlp_forward.1']
    #allocation4 [shape = 'u8[524288]{0}', space=vmem, size = 0x80000, scoped, tag = 'input window, operand 3, single buffered']
    #allocation5 [shape = 's32[1]{0}', space=sflag, size = 0x4, scoped, tag = 'scoped memory for mlp_forward.1']
    %10 = vsyncpa [#allocation3], 0
    %11 = vsyncpa [#allocation5], 0
    // Predicated region
    $region2: #{mlp_forward.1} parent=1 // pred_check
      _
    $region3: #{mlp_forward.1} parent=1 // pred_check_branch
      %13 = sbr.rel (0) target = $region5
    $region4: #{mlp_forward.1} parent=1 // pred_region
      _
    $region5: #{mlp_forward.1} parent=1 // pred_fallthru
      _
    // Predicated region
    $region6: #{mlp_forward.1} parent=1 // pred_check
      _
    $region7: #{mlp_forward.1} parent=1 // pred_check_branch
      %15 = sbr.rel (0) target = $region9
    $region8: #{mlp_forward.1} parent=1 // pred_region
      %17 = vsyncadd [#allocation3], 0
      %s18 = sshll.u32 %s1, 4
      %s19 = int_to_ptr.hbm [resolvable:$true] %s18
      %s20 = sshll.u32 [#allocation2], 4
      %s21 = int_to_ptr.vmem [resolvable:$true] %s20
      %26 = dma.hbm_to_vmem [thread:$0]  %s19, 16384, %s21, [#allocation3], 128, 128, 8
    $region9: #{mlp_forward.1} parent=1 // pred_fallthru
      _
    // Predicated region
    $region10: #{mlp_forward.1} parent=1 // pred_check
      _
    $region11: #{mlp_forward.1} parent=1 // pred_check_branch
      %28 = sbr.rel (0) target = $region13
    $region12: #{mlp_forward.1} parent=1 // pred_region
      _
    $region13: #{mlp_forward.1} parent=1 // pred_fallthru
      _
    // Predicated region
    $region14: #{mlp_forward.1} parent=1 // pred_check
      _
    $region15: #{mlp_forward.1} parent=1 // pred_check_branch
      %30 = sbr.rel (0) target = $region17
    $region16: #{mlp_forward.1} parent=1 // pred_region
      %32 = vsyncadd [#allocation5], 0
      %s33 = sshll.u32 %s3, 4
      %s34 = int_to_ptr.hbm [resolvable:$true] %s33
      %s35 = sshll.u32 [#allocation4], 4
      %s36 = int_to_ptr.vmem [resolvable:$true] %s35
      %41 = dma.hbm_to_vmem [thread:$0]  %s34, 16384, %s36, [#allocation5], 1024, 1024, 64
    $region17: #{mlp_forward.1} parent=1 // pred_fallthru
      _
    // Predicated region
    $region18: #{mlp_forward.1} parent=1 // pred_check
      _
    $region19: #{mlp_forward.1} parent=1 // pred_check_branch
      %43 = sbr.rel (0) target = $region21
    $region20: #{mlp_forward.1} parent=1 // pred_region
      _
    $region21: #{mlp_forward.1} parent=1 // pred_fallthru
      _
    // Predicated region
    $region22: #{mlp_forward.1} parent=1 // pred_check
      _
    $region23: #{mlp_forward.1} parent=1 // pred_check_branch
      %45 = sbr.rel (0) target = $region25
    $region24: #{mlp_forward.1} parent=1 // pred_region
      %47 = dma.done [#allocation3], 16384
    $region25: #{mlp_forward.1} parent=1 // pred_fallthru
      _
    // Predicated region
    $region26: #{mlp_forward.1} parent=1 // pred_check
      _
    $region27: #{mlp_forward.1} parent=1 // pred_check_branch
      %49 = sbr.rel (0) target = $region29
    $region28: #{mlp_forward.1} parent=1 // pred_region
      %51 = dma.done [#allocation5], 16384
    $region29: #{mlp_forward.1} parent=1 // pred_fallthru
      _
    %v52 = vld [vmem:[%s0] sm:$0xff]
    %v53 = vld [vmem:[%s0 + $0x8] sm:$0xff]
    %v54 = vld [vmem:[#allocation2] sm:$0xff]
    %v55 = vld [vmem:[#allocation2 + $0x8] sm:$0xff]
    %v56 = vld [vmem:[#allocation2 + $0x10] sm:$0xff]
    %v57 = vld [vmem:[#allocation2 + $0x18] sm:$0xff]
    %v58 = vld [vmem:[#allocation2 + $0x20] sm:$0xff]
    %v59 = vld [vmem:[#allocation2 + $0x28] sm:$0xff]
    %v60 = vld [vmem:[#allocation2 + $0x30] sm:$0xff]
    %v61 = vld [vmem:[#allocation2 + $0x38] sm:$0xff]
    %v62 = vld [vmem:[#allocation2 + $0x40] sm:$0xff]
    %v63 = vld [vmem:[#allocation2 + $0x48] sm:$0xff]
    %v64 = vld [vmem:[#allocation2 + $0x50] sm:$0xff]
    %v65 = vld [vmem:[#allocation2 + $0x58] sm:$0xff]
    %v66 = vld [vmem:[#allocation2 + $0x60] sm:$0xff]
    %v67 = vld [vmem:[#allocation2 + $0x68] sm:$0xff]
    %v68 = vld [vmem:[#allocation2 + $0x70] sm:$0xff]
    %v69 = vld [vmem:[#allocation2 + $0x78] sm:$0xff]
    %v70 = vld [vmem:[#allocation2 + $0x80] sm:$0xff]
    %v71 = vld [vmem:[#allocation2 + $0x88] sm:$0xff]
    %v72 = vld [vmem:[#allocation2 + $0x90] sm:$0xff]
    %v73 = vld [vmem:[#allocation2 + $0x98] sm:$0xff]
    %v74 = vld [vmem:[#allocation2 + $0xa0] sm:$0xff]
    %v75 = vld [vmem:[#allocation2 + $0xa8] sm:$0xff]
    %v76 = vld [vmem:[#allocation2 + $0xb0] sm:$0xff]
    %v77 = vld [vmem:[#allocation2 + $0xb8] sm:$0xff]
    %v78 = vld [vmem:[#allocation2 + $0xc0] sm:$0xff]
    %v79 = vld [vmem:[#allocation2 + $0xc8] sm:$0xff]
    %v80 = vld [vmem:[#allocation2 + $0xd0] sm:$0xff]
    %v81 = vld [vmem:[#allocation2 + $0xd8] sm:$0xff]
    %v82 = vld [vmem:[#allocation2 + $0xe0] sm:$0xff]
    %v83 = vld [vmem:[#allocation2 + $0xe8] sm:$0xff]
    %v84 = vld [vmem:[#allocation2 + $0xf0] sm:$0xff]
    %v85 = vld [vmem:[#allocation2 + $0xf8] sm:$0xff]
    %v86 = vld [vmem:[#allocation2 + $0x100] sm:$0xff]
    %v87 = vld [vmem:[#allocation2 + $0x108] sm:$0xff]
    %v88 = vld [vmem:[#allocation2 + $0x110] sm:$0xff]
    %v89 = vld [vmem:[#allocation2 + $0x118] sm:$0xff]
    %v90 = vld [vmem:[#allocation2 + $0x120] sm:$0xff]
    %v91 = vld [vmem:[#allocation2 + $0x128] sm:$0xff]
    %v92 = vld [vmem:[#allocation2 + $0x130] sm:$0xff]
    %v93 = vld [vmem:[#allocation2 + $0x138] sm:$0xff]
    %v94 = vld [vmem:[#allocation2 + $0x140] sm:$0xff]
    %v95 = vld [vmem:[#allocation2 + $0x148] sm:$0xff]
    %v96 = vld [vmem:[#allocation2 + $0x150] sm:$0xff]
    %v97 = vld [vmem:[#allocation2 + $0x158] sm:$0xff]
    %v98 = vld [vmem:[#allocation2 + $0x160] sm:$0xff]
    %v99 = vld [vmem:[#allocation2 + $0x168] sm:$0xff]
    %v100 = vld [vmem:[#allocation2 + $0x170] sm:$0xff]
    %v101 = vld [vmem:[#allocation2 + $0x178] sm:$0xff]
    %v102 = vld [vmem:[#allocation2 + $0x180] sm:$0xff]
    %v103 = vld [vmem:[#allocation2 + $0x188] sm:$0xff]
    %v104 = vld [vmem:[#allocation2 + $0x190] sm:$0xff]
    %v105 = vld [vmem:[#allocation2 + $0x198] sm:$0xff]
    %v106 = vld [vmem:[#allocation2 + $0x1a0] sm:$0xff]
    %v107 = vld [vmem:[#allocation2 + $0x1a8] sm:$0xff]
    %v108 = vld [vmem:[#allocation2 + $0x1b0] sm:$0xff]
    %v109 = vld [vmem:[#allocation2 + $0x1b8] sm:$0xff]
    %v110 = vld [vmem:[#allocation2 + $0x1c0] sm:$0xff]
    %v111 = vld [vmem:[#allocation2 + $0x1c8] sm:$0xff]
    %v112 = vld [vmem:[#allocation2 + $0x1d0] sm:$0xff]
    %v113 = vld [vmem:[#allocation2 + $0x1d8] sm:$0xff]
    %v114 = vld [vmem:[#allocation2 + $0x1e0] sm:$0xff]
    %v115 = vld [vmem:[#allocation2 + $0x1e8] sm:$0xff]
    %v116 = vld [vmem:[#allocation2 + $0x1f0] sm:$0xff]
    %v117 = vld [vmem:[#allocation2 + $0x1f8] sm:$0xff]
    %v118 = vld [vmem:[#allocation2 + $0x200] sm:$0xff]
    %v119 = vld [vmem:[#allocation2 + $0x208] sm:$0xff]
    %v120 = vld [vmem:[#allocation2 + $0x210] sm:$0xff]
    %v121 = vld [vmem:[#allocation2 + $0x218] sm:$0xff]
    %v122 = vld [vmem:[#allocation2 + $0x220] sm:$0xff]
    %v123 = vld [vmem:[#allocation2 + $0x228] sm:$0xff]
    %v124 = vld [vmem:[#allocation2 + $0x230] sm:$0xff]
    %v125 = vld [vmem:[#allocation2 + $0x238] sm:$0xff]
    %v126 = vld [vmem:[#allocation2 + $0x240] sm:$0xff]
    %v127 = vld [vmem:[#allocation2 + $0x248] sm:$0xff]
    %v128 = vld [vmem:[#allocation2 + $0x250] sm:$0xff]
    %v129 = vld [vmem:[#allocation2 + $0x258] sm:$0xff]
    %v130 = vld [vmem:[#allocation2 + $0x260] sm:$0xff]
    %v131 = vld [vmem:[#allocation2 + $0x268] sm:$0xff]
    %v132 = vld [vmem:[#allocation2 + $0x270] sm:$0xff]
    %v133 = vld [vmem:[#allocation2 + $0x278] sm:$0xff]
    %v134 = vld [vmem:[#allocation2 + $0x280] sm:$0xff]
    %v135 = vld [vmem:[#allocation2 + $0x288] sm:$0xff]
    %v136 = vld [vmem:[#allocation2 + $0x290] sm:$0xff]
    %v137 = vld [vmem:[#allocation2 + $0x298] sm:$0xff]
    %v138 = vld [vmem:[#allocation2 + $0x2a0] sm:$0xff]
    %v139 = vld [vmem:[#allocation2 + $0x2a8] sm:$0xff]
    %v140 = vld [vmem:[#allocation2 + $0x2b0] sm:$0xff]
    %v141 = vld [vmem:[#allocation2 + $0x2b8] sm:$0xff]
    %v142 = vld [vmem:[#allocation2 + $0x2c0] sm:$0xff]
    %v143 = vld [vmem:[#allocation2 + $0x2c8] sm:$0xff]
    %v144 = vld [vmem:[#allocation2 + $0x2d0] sm:$0xff]
    %v145 = vld [vmem:[#allocation2 + $0x2d8] sm:$0xff]
    %v146 = vld [vmem:[#allocation2 + $0x2e0] sm:$0xff]
    %v147 = vld [vmem:[#allocation2 + $0x2e8] sm:$0xff]
    %v148 = vld [vmem:[#allocation2 + $0x2f0] sm:$0xff]
    %v149 = vld [vmem:[#allocation2 + $0x2f8] sm:$0xff]
    %v150 = vld [vmem:[#allocation2 + $0x300] sm:$0xff]
    %v151 = vld [vmem:[#allocation2 + $0x308] sm:$0xff]
    %v152 = vld [vmem:[#allocation2 + $0x310] sm:$0xff]
    %v153 = vld [vmem:[#allocation2 + $0x318] sm:$0xff]
    %v154 = vld [vmem:[#allocation2 + $0x320] sm:$0xff]
    %v155 = vld [vmem:[#allocation2 + $0x328] sm:$0xff]
    %v156 = vld [vmem:[#allocation2 + $0x330] sm:$0xff]
    %v157 = vld [vmem:[#allocation2 + $0x338] sm:$0xff]
    %v158 = vld [vmem:[#allocation2 + $0x340] sm:$0xff]
    %v159 = vld [vmem:[#allocation2 + $0x348] sm:$0xff]
    %v160 = vld [vmem:[#allocation2 + $0x350] sm:$0xff]
    %v161 = vld [vmem:[#allocation2 + $0x358] sm:$0xff]
    %v162 = vld [vmem:[#allocation2 + $0x360] sm:$0xff]
    %v163 = vld [vmem:[#allocation2 + $0x368] sm:$0xff]
    %v164 = vld [vmem:[#allocation2 + $0x370] sm:$0xff]
    %v165 = vld [vmem:[#allocation2 + $0x378] sm:$0xff]
    %v166 = vld [vmem:[#allocation2 + $0x380] sm:$0xff]
    %v167 = vld [vmem:[#allocation2 + $0x388] sm:$0xff]
    %v168 = vld [vmem:[#allocation2 + $0x390] sm:$0xff]
    %v169 = vld [vmem:[#allocation2 + $0x398] sm:$0xff]
    %v170 = vld [vmem:[#allocation2 + $0x3a0] sm:$0xff]
    %v171 = vld [vmem:[#allocation2 + $0x3a8] sm:$0xff]
    %v172 = vld [vmem:[#allocation2 + $0x3b0] sm:$0xff]
    %v173 = vld [vmem:[#allocation2 + $0x3b8] sm:$0xff]
    %v174 = vld [vmem:[#allocation2 + $0x3c0] sm:$0xff]
    %v175 = vld [vmem:[#allocation2 + $0x3c8] sm:$0xff]
    %v176 = vld [vmem:[#allocation2 + $0x3d0] sm:$0xff]
    %v177 = vld [vmem:[#allocation2 + $0x3d8] sm:$0xff]
    %v178 = vld [vmem:[#allocation2 + $0x3e0] sm:$0xff]
    %v179 = vld [vmem:[#allocation2 + $0x3e8] sm:$0xff]
    %v180 = vld [vmem:[#allocation2 + $0x3f0] sm:$0xff]
    %v181 = vld [vmem:[#allocation2 + $0x3f8] sm:$0xff]
    %v182 = vld [vmem:[%s2] sm:$0x1]
    %v184 = vperm.slane %v182, 0
    %188 = vst [vmem:[#allocation1] ss:$4 sm:$0xff] %v52
    %s189 = scalar_lea.vmem [#allocation1], 32
    %190 = vst [vmem:[%s189] ss:$4 sm:$0xff] %v53
    %v191 = vld.sshfl [vmem:[#allocation1] sm:$0xff pattern:$0x73625140]
    %v192 = vld.sshfl [vmem:[#allocation1 + $0x8] sm:$0xff pattern:$0x73625140]
    %v193 = vld.sshfl [vmem:[#allocation1 + $0x10] sm:$0xff pattern:$0x73625140]
    %v194 = vld.sshfl [vmem:[#allocation1 + $0x18] sm:$0xff pattern:$0x73625140]
    %v195 = vld.sshfl [vmem:[#allocation1 + $0x20] sm:$0xff pattern:$0x73625140]
    %v196 = vld.sshfl [vmem:[#allocation1 + $0x28] sm:$0xff pattern:$0x73625140]
    %v197 = vld.sshfl [vmem:[#allocation1 + $0x30] sm:$0xff pattern:$0x73625140]
    %v198 = vld.sshfl [vmem:[#allocation1 + $0x38] sm:$0xff pattern:$0x73625140]
    %207 = vmatpush.msra.mxu0 %v69
    %208 = vmatpush.msra.mxu0 %v68
    %209 = vmatpush.msra.mxu0 %v67
    %210 = vmatpush.msra.mxu0 %v66
    %211 = vmatpush.msra.mxu0 %v65
    %212 = vmatpush.msra.mxu0 %v64
    %213 = vmatpush.msra.mxu0 %v63
    %214 = vmatpush.msra.mxu0 %v62
    %215 = vmatpush.msra.mxu0 %v61
    %216 = vmatpush.msra.mxu0 %v60
    %217 = vmatpush.msra.mxu0 %v59
    %218 = vmatpush.msra.mxu0 %v58
    %219 = vmatpush.msra.mxu0 %v57
    %220 = vmatpush.msra.mxu0 %v56
    %221 = vmatpush.msra.mxu0 %v55
    %222 = vmatpush.msra.mxu0 %v54
    %223 = vmatmul.f32.gmra.mxu0 %v191
    %v224 = vpop.f32.mrf.mxu0
    %v225 = vadd.f32 %v184, %v224
    %226 = vdwg.mxu0
    %227 = vmatpush.msra.mxu0 %v85
    %228 = vmatpush.msra.mxu0 %v84
    %229 = vmatpush.msra.mxu0 %v83
    %230 = vmatpush.msra.mxu0 %v82
    %231 = vmatpush.msra.mxu0 %v81
    %232 = vmatpush.msra.mxu0 %v80
    %233 = vmatpush.msra.mxu0 %v79
    %234 = vmatpush.msra.mxu0 %v78
    %235 = vmatpush.msra.mxu0 %v77
    %236 = vmatpush.msra.mxu0 %v76
    %237 = vmatpush.msra.mxu0 %v75
    %238 = vmatpush.msra.mxu0 %v74
    %239 = vmatpush.msra.mxu0 %v73
    %240 = vmatpush.msra.mxu0 %v72
    %241 = vmatpush.msra.mxu0 %v71
    %242 = vmatpush.msra.mxu0 %v70
    %243 = vmatmul.f32.gmra.mxu0 %v192
    %v244 = vpop.f32.mrf.mxu0
    %v245 = vadd.f32 %v225, %v244
    %246 = vdwg.mxu0
    %247 = vmatpush.msra.mxu0 %v101
    %248 = vmatpush.msra.mxu0 %v100
    %249 = vmatpush.msra.mxu0 %v99
    %250 = vmatpush.msra.mxu0 %v98
    %251 = vmatpush.msra.mxu0 %v97
    %252 = vmatpush.msra.mxu0 %v96
    %253 = vmatpush.msra.mxu0 %v95
    %254 = vmatpush.msra.mxu0 %v94
    %255 = vmatpush.msra.mxu0 %v93
    %256 = vmatpush.msra.mxu0 %v92
    %257 = vmatpush.msra.mxu0 %v91
    %258 = vmatpush.msra.mxu0 %v90
    %259 = vmatpush.msra.mxu0 %v89
    %260 = vmatpush.msra.mxu0 %v88
    %261 = vmatpush.msra.mxu0 %v87
    %262 = vmatpush.msra.mxu0 %v86
    %263 = vmatmul.f32.gmra.mxu0 %v193
    %v264 = vpop.f32.mrf.mxu0
    %v265 = vadd.f32 %v245, %v264
    %266 = vdwg.mxu0
    %267 = vmatpush.msra.mxu0 %v117
    %268 = vmatpush.msra.mxu0 %v116
    %269 = vmatpush.msra.mxu0 %v115
    %270 = vmatpush.msra.mxu0 %v114
    %271 = vmatpush.msra.mxu0 %v113
    %272 = vmatpush.msra.mxu0 %v112
    %273 = vmatpush.msra.mxu0 %v111
    %274 = vmatpush.msra.mxu0 %v110
    %275 = vmatpush.msra.mxu0 %v109
    %276 = vmatpush.msra.mxu0 %v108
    %277 = vmatpush.msra.mxu0 %v107
    %278 = vmatpush.msra.mxu0 %v106
    %279 = vmatpush.msra.mxu0 %v105
    %280 = vmatpush.msra.mxu0 %v104
    %281 = vmatpush.msra.mxu0 %v103
    %282 = vmatpush.msra.mxu0 %v102
    %283 = vmatmul.f32.gmra.mxu0 %v194
    %v284 = vpop.f32.mrf.mxu0
    %v285 = vadd.f32 %v265, %v284
    %286 = vdwg.mxu0
    %287 = vmatpush.msra.mxu0 %v133
    %288 = vmatpush.msra.mxu0 %v132
    %289 = vmatpush.msra.mxu0 %v131
    %290 = vmatpush.msra.mxu0 %v130
    %291 = vmatpush.msra.mxu0 %v129
    %292 = vmatpush.msra.mxu0 %v128
    %293 = vmatpush.msra.mxu0 %v127
    %294 = vmatpush.msra.mxu0 %v126
    %295 = vmatpush.msra.mxu0 %v125
    %296 = vmatpush.msra.mxu0 %v124
    %297 = vmatpush.msra.mxu0 %v123
    %298 = vmatpush.msra.mxu0 %v122
    %299 = vmatpush.msra.mxu0 %v121
    %300 = vmatpush.msra.mxu0 %v120
    %301 = vmatpush.msra.mxu0 %v119
    %302 = vmatpush.msra.mxu0 %v118
    %303 = vmatmul.f32.gmra.mxu0 %v195
    %v304 = vpop.f32.mrf.mxu0
    %v305 = vadd.f32 %v285, %v304
    %306 = vdwg.mxu0
    %307 = vmatpush.msra.mxu0 %v149
    %308 = vmatpush.msra.mxu0 %v148
    %309 = vmatpush.msra.mxu0 %v147
    %310 = vmatpush.msra.mxu0 %v146
    %311 = vmatpush.msra.mxu0 %v145
    %312 = vmatpush.msra.mxu0 %v144
    %313 = vmatpush.msra.mxu0 %v143
    %314 = vmatpush.msra.mxu0 %v142
    %315 = vmatpush.msra.mxu0 %v141
    %316 = vmatpush.msra.mxu0 %v140
    %317 = vmatpush.msra.mxu0 %v139
    %318 = vmatpush.msra.mxu0 %v138
    %319 = vmatpush.msra.mxu0 %v137
    %320 = vmatpush.msra.mxu0 %v136
    %321 = vmatpush.msra.mxu0 %v135
    %322 = vmatpush.msra.mxu0 %v134
    %323 = vmatmul.f32.gmra.mxu0 %v196
    %v324 = vpop.f32.mrf.mxu0
    %v325 = vadd.f32 %v305, %v324
    %326 = vdwg.mxu0
    %327 = vmatpush.msra.mxu0 %v165
    %328 = vmatpush.msra.mxu0 %v164
    %329 = vmatpush.msra.mxu0 %v163
    %330 = vmatpush.msra.mxu0 %v162
    %331 = vmatpush.msra.mxu0 %v161
    %332 = vmatpush.msra.mxu0 %v160
    %333 = vmatpush.msra.mxu0 %v159
    %334 = vmatpush.msra.mxu0 %v158
    %335 = vmatpush.msra.mxu0 %v157
    %336 = vmatpush.msra.mxu0 %v156
    %337 = vmatpush.msra.mxu0 %v155
    %338 = vmatpush.msra.mxu0 %v154
    %339 = vmatpush.msra.mxu0 %v153
    %340 = vmatpush.msra.mxu0 %v152
    %341 = vmatpush.msra.mxu0 %v151
    %342 = vmatpush.msra.mxu0 %v150
    %343 = vmatmul.f32.gmra.mxu0 %v197
    %v344 = vpop.f32.mrf.mxu0
    %v345 = vadd.f32 %v325, %v344
    %346 = vdwg.mxu0
    %347 = vmatpush.msra.mxu0 %v181
    %348 = vmatpush.msra.mxu0 %v180
    %349 = vmatpush.msra.mxu0 %v179
    %350 = vmatpush.msra.mxu0 %v178
    %351 = vmatpush.msra.mxu0 %v177
    %352 = vmatpush.msra.mxu0 %v176
    %353 = vmatpush.msra.mxu0 %v175
    %354 = vmatpush.msra.mxu0 %v174
    %355 = vmatpush.msra.mxu0 %v173
    %356 = vmatpush.msra.mxu0 %v172
    %357 = vmatpush.msra.mxu0 %v171
    %358 = vmatpush.msra.mxu0 %v170
    %359 = vmatpush.msra.mxu0 %v169
    %360 = vmatpush.msra.mxu0 %v168
    %361 = vmatpush.msra.mxu0 %v167
    %362 = vmatpush.msra.mxu0 %v166
    %363 = vmatmul.f32.gmra.mxu0 %v198
    %v364 = vpop.f32.mrf.mxu0
    %v365 = vadd.f32 %v345, %v364
    %366 = vdwg.mxu0
    %v367 = vmax.f32 %v365, 0.0
    %v368 = vld [vmem:[#allocation4] sm:$0xff]
    %v369 = vld [vmem:[#allocation4 + $0x8] sm:$0xff]
    %v370 = vld [vmem:[#allocation4 + $0x10] sm:$0xff]
    %v371 = vld [vmem:[#allocation4 + $0x18] sm:$0xff]
    %v372 = vld [vmem:[#allocation4 + $0x20] sm:$0xff]
    %v373 = vld [vmem:[#allocation4 + $0x28] sm:$0xff]
    %v374 = vld [vmem:[#allocation4 + $0x30] sm:$0xff]
    %v375 = vld [vmem:[#allocation4 + $0x38] sm:$0xff]
    %v376 = vld [vmem:[#allocation4 + $0x40] sm:$0xff]
    %v377 = vld [vmem:[#allocation4 + $0x48] sm:$0xff]
    %v378 = vld [vmem:[#allocation4 + $0x50] sm:$0xff]
    %v379 = vld [vmem:[#allocation4 + $0x58] sm:$0xff]
    %v380 = vld [vmem:[#allocation4 + $0x60] sm:$0xff]
    %v381 = vld [vmem:[#allocation4 + $0x68] sm:$0xff]
    %v382 = vld [vmem:[#allocation4 + $0x70] sm:$0xff]
    %v383 = vld [vmem:[#allocation4 + $0x78] sm:$0xff]
    %v384 = vld [vmem:[#allocation4 + $0x80] sm:$0xff]
    %v385 = vld [vmem:[#allocation4 + $0x88] sm:$0xff]
    %v386 = vld [vmem:[#allocation4 + $0x90] sm:$0xff]
    %v387 = vld [vmem:[#allocation4 + $0x98] sm:$0xff]
    %v388 = vld [vmem:[#allocation4 + $0xa0] sm:$0xff]
    %v389 = vld [vmem:[#allocation4 + $0xa8] sm:$0xff]
    %v390 = vld [vmem:[#allocation4 + $0xb0] sm:$0xff]
    %v391 = vld [vmem:[#allocation4 + $0xb8] sm:$0xff]
    %v392 = vld [vmem:[#allocation4 + $0xc0] sm:$0xff]
    %v393 = vld [vmem:[#allocation4 + $0xc8] sm:$0xff]
    %v394 = vld [vmem:[#allocation4 + $0xd0] sm:$0xff]
    %v395 = vld [vmem:[#allocation4 + $0xd8] sm:$0xff]
    %v396 = vld [vmem:[#allocation4 + $0xe0] sm:$0xff]
    %v397 = vld [vmem:[#allocation4 + $0xe8] sm:$0xff]
    %v398 = vld [vmem:[#allocation4 + $0xf0] sm:$0xff]
    %v399 = vld [vmem:[#allocation4 + $0xf8] sm:$0xff]
    %v400 = vld [vmem:[#allocation4 + $0x100] sm:$0xff]
    %v401 = vld [vmem:[#allocation4 + $0x108] sm:$0xff]
    %v402 = vld [vmem:[#allocation4 + $0x110] sm:$0xff]
    %v403 = vld [vmem:[#allocation4 + $0x118] sm:$0xff]
    %v404 = vld [vmem:[#allocation4 + $0x120] sm:$0xff]
    %v405 = vld [vmem:[#allocation4 + $0x128] sm:$0xff]
    %v406 = vld [vmem:[#allocation4 + $0x130] sm:$0xff]
    %v407 = vld [vmem:[#allocation4 + $0x138] sm:$0xff]
    %v408 = vld [vmem:[#allocation4 + $0x140] sm:$0xff]
    %v409 = vld [vmem:[#allocation4 + $0x148] sm:$0xff]
    %v410 = vld [vmem:[#allocation4 + $0x150] sm:$0xff]
    %v411 = vld [vmem:[#allocation4 + $0x158] sm:$0xff]
    %v412 = vld [vmem:[#allocation4 + $0x160] sm:$0xff]
    %v413 = vld [vmem:[#allocation4 + $0x168] sm:$0xff]
    %v414 = vld [vmem:[#allocation4 + $0x170] sm:$0xff]
    %v415 = vld [vmem:[#allocation4 + $0x178] sm:$0xff]
    %v416 = vld [vmem:[#allocation4 + $0x180] sm:$0xff]
    %v417 = vld [vmem:[#allocation4 + $0x188] sm:$0xff]
    %v418 = vld [vmem:[#allocation4 + $0x190] sm:$0xff]
    %v419 = vld [vmem:[#allocation4 + $0x198] sm:$0xff]
    %v420 = vld [vmem:[#allocation4 + $0x1a0] sm:$0xff]
    %v421 = vld [vmem:[#allocation4 + $0x1a8] sm:$0xff]
    %v422 = vld [vmem:[#allocation4 + $0x1b0] sm:$0xff]
    %v423 = vld [vmem:[#allocation4 + $0x1b8] sm:$0xff]
    %v424 = vld [vmem:[#allocation4 + $0x1c0] sm:$0xff]
    %v425 = vld [vmem:[#allocation4 + $0x1c8] sm:$0xff]
    %v426 = vld [vmem:[#allocation4 + $0x1d0] sm:$0xff]
    %v427 = vld [vmem:[#allocation4 + $0x1d8] sm:$0xff]
    %v428 = vld [vmem:[#allocation4 + $0x1e0] sm:$0xff]
    %v429 = vld [vmem:[#allocation4 + $0x1e8] sm:$0xff]
    %v430 = vld [vmem:[#allocation4 + $0x1f0] sm:$0xff]
    %v431 = vld [vmem:[#allocation4 + $0x1f8] sm:$0xff]
    %v432 = vld [vmem:[#allocation4 + $0x200] sm:$0xff]
    %v433 = vld [vmem:[#allocation4 + $0x208] sm:$0xff]
    %v434 = vld [vmem:[#allocation4 + $0x210] sm:$0xff]
    %v435 = vld [vmem:[#allocation4 + $0x218] sm:$0xff]
    %v436 = vld [vmem:[#allocation4 + $0x220] sm:$0xff]
    %v437 = vld [vmem:[#allocation4 + $0x228] sm:$0xff]
    %v438 = vld [vmem:[#allocation4 + $0x230] sm:$0xff]
    %v439 = vld [vmem:[#allocation4 + $0x238] sm:$0xff]
    %v440 = vld [vmem:[#allocation4 + $0x240] sm:$0xff]
    %v441 = vld [vmem:[#allocation4 + $0x248] sm:$0xff]
    %v442 = vld [vmem:[#allocation4 + $0x250] sm:$0xff]
    %v443 = vld [vmem:[#allocation4 + $0x258] sm:$0xff]
    %v444 = vld [vmem:[#allocation4 + $0x260] sm:$0xff]
    %v445 = vld [vmem:[#allocation4 + $0x268] sm:$0xff]
    %v446 = vld [vmem:[#allocation4 + $0x270] sm:$0xff]
    %v447 = vld [vmem:[#allocation4 + $0x278] sm:$0xff]
    %v448 = vld [vmem:[#allocation4 + $0x280] sm:$0xff]
    %v449 = vld [vmem:[#allocation4 + $0x288] sm:$0xff]
    %v450 = vld [vmem:[#allocation4 + $0x290] sm:$0xff]
    %v451 = vld [vmem:[#allocation4 + $0x298] sm:$0xff]
    %v452 = vld [vmem:[#allocation4 + $0x2a0] sm:$0xff]
    %v453 = vld [vmem:[#allocation4 + $0x2a8] sm:$0xff]
    %v454 = vld [vmem:[#allocation4 + $0x2b0] sm:$0xff]
    %v455 = vld [vmem:[#allocation4 + $0x2b8] sm:$0xff]
    %v456 = vld [vmem:[#allocation4 + $0x2c0] sm:$0xff]
    %v457 = vld [vmem:[#allocation4 + $0x2c8] sm:$0xff]
    %v458 = vld [vmem:[#allocation4 + $0x2d0] sm:$0xff]
    %v459 = vld [vmem:[#allocation4 + $0x2d8] sm:$0xff]
    %v460 = vld [vmem:[#allocation4 + $0x2e0] sm:$0xff]
    %v461 = vld [vmem:[#allocation4 + $0x2e8] sm:$0xff]
    %v462 = vld [vmem:[#allocation4 + $0x2f0] sm:$0xff]
    %v463 = vld [vmem:[#allocation4 + $0x2f8] sm:$0xff]
    %v464 = vld [vmem:[#allocation4 + $0x300] sm:$0xff]
    %v465 = vld [vmem:[#allocation4 + $0x308] sm:$0xff]
    %v466 = vld [vmem:[#allocation4 + $0x310] sm:$0xff]
    %v467 = vld [vmem:[#allocation4 + $0x318] sm:$0xff]
    %v468 = vld [vmem:[#allocation4 + $0x320] sm:$0xff]
    %v469 = vld [vmem:[#allocation4 + $0x328] sm:$0xff]
    %v470 = vld [vmem:[#allocation4 + $0x330] sm:$0xff]
    %v471 = vld [vmem:[#allocation4 + $0x338] sm:$0xff]
    %v472 = vld [vmem:[#allocation4 + $0x340] sm:$0xff]
    %v473 = vld [vmem:[#allocation4 + $0x348] sm:$0xff]
    %v474 = vld [vmem:[#allocation4 + $0x350] sm:$0xff]
    %v475 = vld [vmem:[#allocation4 + $0x358] sm:$0xff]
    %v476 = vld [vmem:[#allocation4 + $0x360] sm:$0xff]
    %v477 = vld [vmem:[#allocation4 + $0x368] sm:$0xff]
    %v478 = vld [vmem:[#allocation4 + $0x370] sm:$0xff]
    %v479 = vld [vmem:[#allocation4 + $0x378] sm:$0xff]
    %v480 = vld [vmem:[#allocation4 + $0x380] sm:$0xff]
    %v481 = vld [vmem:[#allocation4 + $0x388] sm:$0xff]
    %v482 = vld [vmem:[#allocation4 + $0x390] sm:$0xff]
    %v483 = vld [vmem:[#allocation4 + $0x398] sm:$0xff]
    %v484 = vld [vmem:[#allocation4 + $0x3a0] sm:$0xff]
    %v485 = vld [vmem:[#allocation4 + $0x3a8] sm:$0xff]
    %v486 = vld [vmem:[#allocation4 + $0x3b0] sm:$0xff]
    %v487 = vld [vmem:[#allocation4 + $0x3b8] sm:$0xff]
    %v488 = vld [vmem:[#allocation4 + $0x3c0] sm:$0xff]
    %v489 = vld [vmem:[#allocation4 + $0x3c8] sm:$0xff]
    %v490 = vld [vmem:[#allocation4 + $0x3d0] sm:$0xff]
    %v491 = vld [vmem:[#allocation4 + $0x3d8] sm:$0xff]
    %v492 = vld [vmem:[#allocation4 + $0x3e0] sm:$0xff]
    %v493 = vld [vmem:[#allocation4 + $0x3e8] sm:$0xff]
    %v494 = vld [vmem:[#allocation4 + $0x3f0] sm:$0xff]
    %v495 = vld [vmem:[#allocation4 + $0x3f8] sm:$0xff]
    %v496 = vld [vmem:[%s4] sm:$0xff]
    %v498 = vperm.slane %v496, 0
    %v499 = vperm.slane %v496, 1
    %v500 = vperm.slane %v496, 2
    %v501 = vperm.slane %v496, 3
    %v502 = vperm.slane %v496, 4
    %v503 = vperm.slane %v496, 5
    %v504 = vperm.slane %v496, 6
    %v505 = vperm.slane %v496, 7
    %514 = vmatpush.msra.mxu0 %v488
    %515 = vmatpush.msra.mxu0 %v480
    %516 = vmatpush.msra.mxu0 %v472
    %517 = vmatpush.msra.mxu0 %v464
    %518 = vmatpush.msra.mxu0 %v456
    %519 = vmatpush.msra.mxu0 %v448
    %520 = vmatpush.msra.mxu0 %v440
    %521 = vmatpush.msra.mxu0 %v432
    %522 = vmatpush.msra.mxu0 %v424
    %523 = vmatpush.msra.mxu0 %v416
    %524 = vmatpush.msra.mxu0 %v408
    %525 = vmatpush.msra.mxu0 %v400
    %526 = vmatpush.msra.mxu0 %v392
    %527 = vmatpush.msra.mxu0 %v384
    %528 = vmatpush.msra.mxu0 %v376
    %529 = vmatpush.msra.mxu0 %v368
    %530 = vmatmul.f32.gmra.mxu0 %v367
    %v531 = vpop.f32.mrf.mxu0
    %v532 = vadd.f32 %v498, %v531
    %533 = vdwg.mxu0
    %534 = vmatpush.msra.mxu0 %v489
    %535 = vmatpush.msra.mxu0 %v481
    %536 = vmatpush.msra.mxu0 %v473
    %537 = vmatpush.msra.mxu0 %v465
    %538 = vmatpush.msra.mxu0 %v457
    %539 = vmatpush.msra.mxu0 %v449
    %540 = vmatpush.msra.mxu0 %v441
    %541 = vmatpush.msra.mxu0 %v433
    %542 = vmatpush.msra.mxu0 %v425
    %543 = vmatpush.msra.mxu0 %v417
    %544 = vmatpush.msra.mxu0 %v409
    %545 = vmatpush.msra.mxu0 %v401
    %546 = vmatpush.msra.mxu0 %v393
    %547 = vmatpush.msra.mxu0 %v385
    %548 = vmatpush.msra.mxu0 %v377
    %549 = vmatpush.msra.mxu0 %v369
    %550 = vmatmul.f32.gmra.mxu0 %v367
    %v551 = vpop.f32.mrf.mxu0
    %v552 = vadd.f32 %v499, %v551
    %553 = vdwg.mxu0
    %554 = vmatpush.msra.mxu0 %v490
    %555 = vmatpush.msra.mxu0 %v482
    %556 = vmatpush.msra.mxu0 %v474
    %557 = vmatpush.msra.mxu0 %v466
    %558 = vmatpush.msra.mxu0 %v458
    %559 = vmatpush.msra.mxu0 %v450
    %560 = vmatpush.msra.mxu0 %v442
    %561 = vmatpush.msra.mxu0 %v434
    %562 = vmatpush.msra.mxu0 %v426
    %563 = vmatpush.msra.mxu0 %v418
    %564 = vmatpush.msra.mxu0 %v410
    %565 = vmatpush.msra.mxu0 %v402
    %566 = vmatpush.msra.mxu0 %v394
    %567 = vmatpush.msra.mxu0 %v386
    %568 = vmatpush.msra.mxu0 %v378
    %569 = vmatpush.msra.mxu0 %v370
    %570 = vmatmul.f32.gmra.mxu0 %v367
    %v571 = vpop.f32.mrf.mxu0
    %v572 = vadd.f32 %v500, %v571
    %573 = vdwg.mxu0
    %574 = vmatpush.msra.mxu0 %v491
    %575 = vmatpush.msra.mxu0 %v483
    %576 = vmatpush.msra.mxu0 %v475
    %577 = vmatpush.msra.mxu0 %v467
    %578 = vmatpush.msra.mxu0 %v459
    %579 = vmatpush.msra.mxu0 %v451
    %580 = vmatpush.msra.mxu0 %v443
    %581 = vmatpush.msra.mxu0 %v435
    %582 = vmatpush.msra.mxu0 %v427
    %583 = vmatpush.msra.mxu0 %v419
    %584 = vmatpush.msra.mxu0 %v411
    %585 = vmatpush.msra.mxu0 %v403
    %586 = vmatpush.msra.mxu0 %v395
    %587 = vmatpush.msra.mxu0 %v387
    %588 = vmatpush.msra.mxu0 %v379
    %589 = vmatpush.msra.mxu0 %v371
    %590 = vmatmul.f32.gmra.mxu0 %v367
    %v591 = vpop.f32.mrf.mxu0
    %v592 = vadd.f32 %v501, %v591
    %593 = vdwg.mxu0
    %594 = vmatpush.msra.mxu0 %v492
    %595 = vmatpush.msra.mxu0 %v484
    %596 = vmatpush.msra.mxu0 %v476
    %597 = vmatpush.msra.mxu0 %v468
    %598 = vmatpush.msra.mxu0 %v460
    %599 = vmatpush.msra.mxu0 %v452
    %600 = vmatpush.msra.mxu0 %v444
    %601 = vmatpush.msra.mxu0 %v436
    %602 = vmatpush.msra.mxu0 %v428
    %603 = vmatpush.msra.mxu0 %v420
    %604 = vmatpush.msra.mxu0 %v412
    %605 = vmatpush.msra.mxu0 %v404
    %606 = vmatpush.msra.mxu0 %v396
    %607 = vmatpush.msra.mxu0 %v388
    %608 = vmatpush.msra.mxu0 %v380
    %609 = vmatpush.msra.mxu0 %v372
    %610 = vmatmul.f32.gmra.mxu0 %v367
    %v611 = vpop.f32.mrf.mxu0
    %v612 = vadd.f32 %v502, %v611
    %613 = vdwg.mxu0
    %614 = vmatpush.msra.mxu0 %v493
    %615 = vmatpush.msra.mxu0 %v485
    %616 = vmatpush.msra.mxu0 %v477
    %617 = vmatpush.msra.mxu0 %v469
    %618 = vmatpush.msra.mxu0 %v461
    %619 = vmatpush.msra.mxu0 %v453
    %620 = vmatpush.msra.mxu0 %v445
    %621 = vmatpush.msra.mxu0 %v437
    %622 = vmatpush.msra.mxu0 %v429
    %623 = vmatpush.msra.mxu0 %v421
    %624 = vmatpush.msra.mxu0 %v413
    %625 = vmatpush.msra.mxu0 %v405
    %626 = vmatpush.msra.mxu0 %v397
    %627 = vmatpush.msra.mxu0 %v389
    %628 = vmatpush.msra.mxu0 %v381
    %629 = vmatpush.msra.mxu0 %v373
    %630 = vmatmul.f32.gmra.mxu0 %v367
    %v631 = vpop.f32.mrf.mxu0
    %v632 = vadd.f32 %v503, %v631
    %633 = vdwg.mxu0
    %634 = vmatpush.msra.mxu0 %v494
    %635 = vmatpush.msra.mxu0 %v486
    %636 = vmatpush.msra.mxu0 %v478
    %637 = vmatpush.msra.mxu0 %v470
    %638 = vmatpush.msra.mxu0 %v462
    %639 = vmatpush.msra.mxu0 %v454
    %640 = vmatpush.msra.mxu0 %v446
    %641 = vmatpush.msra.mxu0 %v438
    %642 = vmatpush.msra.mxu0 %v430
    %643 = vmatpush.msra.mxu0 %v422
    %644 = vmatpush.msra.mxu0 %v414
    %645 = vmatpush.msra.mxu0 %v406
    %646 = vmatpush.msra.mxu0 %v398
    %647 = vmatpush.msra.mxu0 %v390
    %648 = vmatpush.msra.mxu0 %v382
    %649 = vmatpush.msra.mxu0 %v374
    %650 = vmatmul.f32.gmra.mxu0 %v367
    %v651 = vpop.f32.mrf.mxu0
    %v652 = vadd.f32 %v504, %v651
    %653 = vdwg.mxu0
    %654 = vmatpush.msra.mxu0 %v495
    %655 = vmatpush.msra.mxu0 %v487
    %656 = vmatpush.msra.mxu0 %v479
    %657 = vmatpush.msra.mxu0 %v471
    %658 = vmatpush.msra.mxu0 %v463
    %659 = vmatpush.msra.mxu0 %v455
    %660 = vmatpush.msra.mxu0 %v447
    %661 = vmatpush.msra.mxu0 %v439
    %662 = vmatpush.msra.mxu0 %v431
    %663 = vmatpush.msra.mxu0 %v423
    %664 = vmatpush.msra.mxu0 %v415
    %665 = vmatpush.msra.mxu0 %v407
    %666 = vmatpush.msra.mxu0 %v399
    %667 = vmatpush.msra.mxu0 %v391
    %668 = vmatpush.msra.mxu0 %v383
    %669 = vmatpush.msra.mxu0 %v375
    %670 = vmatmul.f32.gmra.mxu0 %v367
    %v671 = vpop.f32.mrf.mxu0
    %v672 = vadd.f32 %v505, %v671
    %673 = vdwg.mxu0
    %v674 = vmax.f32 %v532, 0.0
    %v675 = vmax.f32 %v552, 0.0
    %v676 = vmax.f32 %v572, 0.0
    %v677 = vmax.f32 %v592, 0.0
    %v678 = vmax.f32 %v612, 0.0
    %v679 = vmax.f32 %v632, 0.0
    %v680 = vmax.f32 %v652, 0.0
    %v681 = vmax.f32 %v672, 0.0
    %v690 = vrot.slane %v675, 6
    %v691 = vrot.slane %v676, 4
    %v692 = vrot.slane %v677, 2
    %v693 = vrot.slane %v679, 6
    %v694 = vrot.slane %v680, 4
    %v695 = vrot.slane %v681, 2
    %vm696 = vcmask 1041408
    %v697 = vsel %vm696, %v674, %v690
    %vm698 = vcmask 1045508
    %v699 = vsel %vm698, %v691, %v692
    %vm700 = vcmask 1043456
    %v701 = vsel %vm700, %v697, %v699
    %v702 = vsel %vm696, %v678, %v693
    %v703 = vsel %vm698, %v694, %v695
    %v704 = vsel %vm700, %v702, %v703
    %707 = vst [vmem:[%s5] sm:$0xff] %v701
    %708 = vst [vmem:[%s5 + $0x8] sm:$0xff] %v704
    // Predicated region
    $region30: #{mlp_forward.1} parent=1 // pred_check
      _
    $region31: #{mlp_forward.1} parent=1 // pred_check_branch
      %710 = sbr.rel (0) target = $region33
    $region32: #{mlp_forward.1} parent=1 // pred_region
      _
    $region33: #{mlp_forward.1} parent=1 // pred_fallthru
      _
    // Predicated region
    $region34: #{mlp_forward.1} parent=1 // pred_check
      _
    $region35: #{mlp_forward.1} parent=1 // pred_check_branch
      %712 = sbr.rel (0) target = $region37
    $region36: #{mlp_forward.1} parent=1 // pred_region
      _
    $region37: #{mlp_forward.1} parent=1 // pred_fallthru
      _
    %713 = vsyncpa [#allocation3], 1
    %714 = vsyncpa [#allocation5], 1

</llo_original>
